<compile_context>
chip_gen: v6e
topology: v6e:2x2x1
jax: 0.10.0
libtpu: 0.0.40
codegen_flags: <defaults>
</compile_context>

<pallas_src>
import functools

import jax
import jax.numpy as jnp
from jax.experimental import pallas as pl
from jax.experimental.pallas import tpu as pltpu

_LANE = 128
_SUBLANE = 8
_CHUNK = _SUBLANE * _LANE       # 1024-element alignment of the kernel region
_MAX_BLOCK_ROWS = 4096          # (4096, 128) f32 block = 2 MiB per pipeline buffer
_MIN_SPLIT_ROWS = 256           # don't split work smaller than this per core


def _round_up(v, m):
    return (v + m - 1) // m * m


def _nmse_kernel(x_hat_ref, x_ref, p_ref, m_ref, *,
                 rows, block_rows, steps, needs_mask):
    c = pl.program_id(0)   # core-split index ("parallel")
    i = pl.program_id(1)   # sequential block index within the split ("arbitrary")

    @pl.when(i == 0)
    def _init():
        p_ref[...] = jnp.zeros_like(p_ref)   # running sum(x^2) for this split
        m_ref[...] = jnp.zeros_like(m_ref)   # running sum((x - x_hat)^2)

    x = x_ref[...].astype(jnp.float32)
    xh = x_hat_ref[...].astype(jnp.float32)
    d = x - xh
    xx = x * x
    dd = d * d

    def _accumulate(xx_v, dd_v):
        # (block_rows, 128) -> (block_rows//8, 8, 128) is a tile-aligned split
        # (no relayout); the leading-axis sum is plain VPU vreg adds, and only
        # one (8, 128) accumulator vreg is read/written per step.
        p_ref[...] += xx_v.reshape(-1, _SUBLANE, _LANE).sum(axis=0, keepdims=True)
        m_ref[...] += dd_v.reshape(-1, _SUBLANE, _LANE).sum(axis=0, keepdims=True)

    if needs_mask:
        gb = c * steps + i                   # logical (unclamped) block index
        valid = rows - gb * block_rows       # rows of this block holding real data

        @pl.when(valid >= block_rows)
        def _full_block():
            _accumulate(xx, dd)

        @pl.when(valid < block_rows)
        def _ragged_block():
            # Only the (at most one) partial block pays for iota/compare/select.
            row_ids = jax.lax.broadcasted_iota(jnp.int32, (block_rows, _LANE), 0)
            keep = row_ids < valid
            _accumulate(jnp.where(keep, xx, 0.0), jnp.where(keep, dd, 0.0))
    else:
        _accumulate(xx, dd)


def nmse_loss(x_hat, x, reduction="mean"):
    """Pallas NMSE loss. x_hat, x: arrays of identical shape (any rank)."""
    assert x_hat.shape == x.shape

    n = x.size                         # static
    xf = jnp.ravel(x)
    xhf = jnp.ravel(x_hat)

    # Kernel region: largest prefix whose length is a multiple of 8*128 so it
    # reshapes (for free) to a lane-dense (rows, 128) slab with rows % 8 == 0.
    # No full-array jnp.pad copy; the tiny remainder is handled below.
    n_main = (n // _CHUNK) * _CHUNK

    power = jnp.float32(0.0)
    mse = jnp.float32(0.0)

    if n_main:
        rows = n_main // _LANE                       # multiple of 8
        x2d = xf[:n_main].reshape(rows, _LANE)
        xh2d = xhf[:n_main].reshape(rows, _LANE)

        if rows < 2 * _MIN_SPLIT_ROWS:
            # Too small to be worth splitting across TensorCores.
            num_splits = 1
            grid_blocks = 1
            block_rows = rows
        else:
            # 2-way split of the row range (leading "parallel" grid axis):
            # up to ~2x on v7x; a plain serial loop on 1-TC chips.  The block
            # count is kept even so the halves are balanced and (for any
            # practical size) no block is ever read twice.
            num_splits = 2
            grid_blocks = 2 * pl.cdiv(rows, 2 * _MAX_BLOCK_ROWS)
            block_rows = _round_up(pl.cdiv(rows, grid_blocks), _SUBLANE)
        steps = grid_blocks // num_splits
        data_blocks = pl.cdiv(rows, block_rows)
        needs_clamp = grid_blocks > data_blocks      # only for absurdly large inputs
        needs_mask = needs_clamp or (rows % block_rows != 0)

        if needs_clamp:
            def in_map(c, i):
                return (jnp.minimum(c * steps + i, data_blocks - 1), 0)
        else:
            def in_map(c, i):
                return (c * steps + i, 0)

        in_block = pl.BlockSpec((block_rows, _LANE), in_map)
        out_block = pl.BlockSpec((1, _SUBLANE, _LANE), lambda c, i: (c, 0, 0))
        acc_shape = jax.ShapeDtypeStruct((num_splits, _SUBLANE, _LANE), jnp.float32)

        kernel = functools.partial(
            _nmse_kernel,
            rows=rows, block_rows=block_rows, steps=steps, needs_mask=needs_mask)

        p_part, m_part = pl.pallas_call(
            kernel,
            out_shape=(acc_shape, acc_shape),
            grid_spec=pltpu.PrefetchScalarGridSpec(
                num_scalar_prefetch=0,
                grid=(num_splits, steps),
                in_specs=[in_block, in_block],
                out_specs=(out_block, out_block),
            ),
            compiler_params=pltpu.CompilerParams(
                dimension_semantics=("parallel", "arbitrary")),
        )(xh2d, x2d)

        power = power + jnp.sum(p_part)
        mse = mse + jnp.sum(m_part)

    if n_main != n:
        # < 1024-element tail: negligible cost, plain jnp (no pad copy).
        xt = xf[n_main:].astype(jnp.float32)
        xht = xhf[n_main:].astype(jnp.float32)
        dt = xt - xht
        power = power + jnp.sum(xt * xt)
        mse = mse + jnp.sum(dt * dt)

    # Matches the PyTorch module (sum(x^2) == 0 -> inf/nan, same as reference).
    nmse = mse / power
    # nmse is a scalar; mean == sum == identity, matching the PyTorch module.
    if reduction == "mean":
        return jnp.mean(nmse)
    return jnp.sum(nmse)


if __name__ == "__main__":
    key = jax.random.PRNGKey(0)
    k1, k2, k3, k4, k5, k6 = jax.random.split(key, 6)

    # 1) Small lane-aligned case (2*4*16*16 = 2048 elements): single block.
    x = jax.random.normal(k1, (2, 4, 16, 16), dtype=jnp.float32)
    x_hat = x + 0.1 * jax.random.normal(k2, (2, 4, 16, 16), dtype=jnp.float32)
    result = nmse_loss(x_hat, x, reduction="mean")
    jax.block_until_ready(result)
    ref = jnp.sum((x - x_hat) ** 2) / jnp.sum(x ** 2)
    assert jnp.allclose(result, ref, rtol=1e-5, atol=1e-7), (result, ref)

    # 2) 2-way split path + 64-element jnp tail (4*4*130*130 = 270400 elems).
    xb = jax.random.normal(k3, (4, 4, 130, 130), dtype=jnp.float32)
    xb_hat = xb + 0.05 * jax.random.normal(k4, (4, 4, 130, 130), dtype=jnp.float32)
    rb = nmse_loss(xb_hat, xb, reduction="sum")
    jax.block_until_ready(rb)
    refb = jnp.sum((xb - xb_hat) ** 2) / jnp.sum(xb ** 2)
    assert jnp.allclose(rb, refb, rtol=1e-4), (rb, refb)

    # 3) 2-way split with a ragged (masked) last block + jnp tail
    #    (2*4*130*131 = 136240 elems -> rows=1064, block_rows=536).
    xc = jax.random.normal(k5, (2, 4, 130, 131), dtype=jnp.float32)
    xc_hat = xc + 0.05 * jax.random.normal(k6, (2, 4, 130, 131), dtype=jnp.float32)
    rc = nmse_loss(xc_hat, xc, reduction="mean")
    jax.block_until_ready(rc)
    refc = jnp.sum((xc - xc_hat) ** 2) / jnp.sum(xc ** 2)
    assert jnp.allclose(rc, refc, rtol=1e-4), (rc, refc)

    print("KERNEL_OK")
</pallas_src>

<mosaic_0001>
module attributes {stable_mosaic.version = 11 : i64} {
  func.func @_nmse_kernel(%arg0: i32, %arg1: i32, %arg2: memref<16x128xf32, #tpu.memory_space<vmem>>, %arg3: memref<16x128xf32, #tpu.memory_space<vmem>>, %arg4: memref<1x8x128xf32, #tpu.memory_space<vmem>>, %arg5: memref<1x8x128xf32, #tpu.memory_space<vmem>>) attributes {dimension_semantics = [#tpu.dimension_semantics<parallel>, #tpu.dimension_semantics<arbitrary>], iteration_bounds = array<i64: 1, 1>, scalar_prefetch = 0 : i64, scratch_operands = 0 : i64, tpu.core_type = #tpu.core_type<tc>, window_params = [{transform_indices = @transform_0, window_bounds = array<i64: 16, 128>}, {transform_indices = @transform_1, window_bounds = array<i64: 16, 128>}, {transform_indices = @transform_2, window_bounds = array<i64: 1, 8, 128>}, {transform_indices = @transform_3, window_bounds = array<i64: 1, 8, 128>}]} {
    %c0_i32 = arith.constant 0 : i32
    %0 = arith.cmpi eq, %arg1, %c0_i32 : i32
    %1 = arith.extui %0 : i1 to i32
    %c0_i32_0 = arith.constant 0 : i32
    %2 = arith.cmpi ne, %1, %c0_i32_0 : i32
    scf.if %2 {
      %cst_17 = arith.constant 0.000000e+00 : f32
      %20 = vector.broadcast %cst_17 : f32 to vector<1x8x128xf32>
      %c0_18 = arith.constant 0 : index
      %c0_19 = arith.constant 0 : index
      %c0_20 = arith.constant 0 : index
      %21 = vector.load %arg4[%c0_18, %c0_19, %c0_20] : memref<1x8x128xf32, #tpu.memory_space<vmem>>, vector<1x8x128xf32>
      tpu.vector_store %arg4[%c0_18, %c0_19, %c0_20], %20 {strides = array<i32>} : memref<1x8x128xf32, #tpu.memory_space<vmem>>, vector<1x8x128xf32>,
      %cst_21 = arith.constant 0.000000e+00 : f32
      %22 = vector.broadcast %cst_21 : f32 to vector<1x8x128xf32>
      %c0_22 = arith.constant 0 : index
      %c0_23 = arith.constant 0 : index
      %c0_24 = arith.constant 0 : index
      %23 = vector.load %arg5[%c0_22, %c0_23, %c0_24] : memref<1x8x128xf32, #tpu.memory_space<vmem>>, vector<1x8x128xf32>
      tpu.vector_store %arg5[%c0_22, %c0_23, %c0_24], %22 {strides = array<i32>} : memref<1x8x128xf32, #tpu.memory_space<vmem>>, vector<1x8x128xf32>,
    } else {
    }
    %c0 = arith.constant 0 : index
    %c0_1 = arith.constant 0 : index
    %3 = vector.load %arg3[%c0, %c0_1] : memref<16x128xf32, #tpu.memory_space<vmem>>, vector<16x128xf32>
    %c0_2 = arith.constant 0 : index
    %c0_3 = arith.constant 0 : index
    %4 = vector.load %arg2[%c0_2, %c0_3] : memref<16x128xf32, #tpu.memory_space<vmem>>, vector<16x128xf32>
    %5 = arith.subf %3, %4 : vector<16x128xf32>
    %6 = arith.mulf %3, %3 : vector<16x128xf32>
    %7 = arith.mulf %5, %5 : vector<16x128xf32>
    %c0_4 = arith.constant 0 : index
    %c0_5 = arith.constant 0 : index
    %c0_6 = arith.constant 0 : index
    %8 = vector.load %arg4[%c0_4, %c0_5, %c0_6] : memref<1x8x128xf32, #tpu.memory_space<vmem>>, vector<1x8x128xf32>
    %9 = vector.shape_cast %6 : vector<16x128xf32> to vector<2x8x128xf32>
    %cst = arith.constant dense<0.000000e+00> : vector<8x128xf32>
    %10 = vector.multi_reduction <add>, %9, %cst [0] : vector<2x8x128xf32> to vector<8x128xf32>
    %11 = vector.shape_cast %10 : vector<8x128xf32> to vector<1x8x128xf32>
    %12 = arith.addf %8, %11 : vector<1x8x128xf32>
    %c0_7 = arith.constant 0 : index
    %c0_8 = arith.constant 0 : index
    %c0_9 = arith.constant 0 : index
    %13 = vector.load %arg4[%c0_7, %c0_8, %c0_9] : memref<1x8x128xf32, #tpu.memory_space<vmem>>, vector<1x8x128xf32>
    tpu.vector_store %arg4[%c0_7, %c0_8, %c0_9], %12 {strides = array<i32>} : memref<1x8x128xf32, #tpu.memory_space<vmem>>, vector<1x8x128xf32>,
    %c0_10 = arith.constant 0 : index
    %c0_11 = arith.constant 0 : index
    %c0_12 = arith.constant 0 : index
    %14 = vector.load %arg5[%c0_10, %c0_11, %c0_12] : memref<1x8x128xf32, #tpu.memory_space<vmem>>, vector<1x8x128xf32>
    %15 = vector.shape_cast %7 : vector<16x128xf32> to vector<2x8x128xf32>
    %cst_13 = arith.constant dense<0.000000e+00> : vector<8x128xf32>
    %16 = vector.multi_reduction <add>, %15, %cst_13 [0] : vector<2x8x128xf32> to vector<8x128xf32>
    %17 = vector.shape_cast %16 : vector<8x128xf32> to vector<1x8x128xf32>
    %18 = arith.addf %14, %17 : vector<1x8x128xf32>
    %c0_14 = arith.constant 0 : index
    %c0_15 = arith.constant 0 : index
    %c0_16 = arith.constant 0 : index
    %19 = vector.load %arg5[%c0_14, %c0_15, %c0_16] : memref<1x8x128xf32, #tpu.memory_space<vmem>>, vector<1x8x128xf32>
    tpu.vector_store %arg5[%c0_14, %c0_15, %c0_16], %18 {strides = array<i32>} : memref<1x8x128xf32, #tpu.memory_space<vmem>>, vector<1x8x128xf32>,
    return
  }
  func.func @transform_0(%arg0: i32, %arg1: i32) -> (i32, i32) {
    %c1_i32 = arith.constant 1 : i32
    %0 = arith.muli %arg0, %c1_i32 : i32
    %1 = arith.addi %0, %arg1 : i32
    %c0_i32 = arith.constant 0 : i32
    %c0_i32_0 = arith.constant 0 : i32
    return %1, %c0_i32 : i32, i32
  }
  func.func @transform_1(%arg0: i32, %arg1: i32) -> (i32, i32) {
    %c1_i32 = arith.constant 1 : i32
    %0 = arith.muli %arg0, %c1_i32 : i32
    %1 = arith.addi %0, %arg1 : i32
    %c0_i32 = arith.constant 0 : i32
    %c0_i32_0 = arith.constant 0 : i32
    return %1, %c0_i32 : i32, i32
  }
  func.func @transform_2(%arg0: i32, %arg1: i32) -> (i32, i32, i32) {
    %c0_i32 = arith.constant 0 : i32
    %c0_i32_0 = arith.constant 0 : i32
    %c0_i32_1 = arith.constant 0 : i32
    return %arg0, %c0_i32, %c0_i32_0 : i32, i32, i32
  }
  func.func @transform_3(%arg0: i32, %arg1: i32) -> (i32, i32, i32) {
    %c0_i32 = arith.constant 0 : i32
    %c0_i32_0 = arith.constant 0 : i32
    %c0_i32_1 = arith.constant 0 : i32
    return %arg0, %c0_i32, %c0_i32_0 : i32, i32, i32
  }
}

</mosaic_0001>

<llo_original>
// kernel: tpu_custom_call.1
$region0: #{tpu_custom_call.1}
  #allocation0 [shape = 'u32[]', space=smem, size = 0x4, offset = 0x4, fixed_abs, tag = 'smem constant byte address 0x4 - core index']
  #allocation1 [shape = 'u32[144,128]{1,0:T(1,128)}', space=vmem, size = 0x12000, scoped, tag = 'internal scratch']
  %s0 = inlined_call_operand.hbm [shape: f32[16,128], index: 0, kind: input, shape index: {}]
  %s1 = inlined_call_operand.hbm [shape: f32[16,128], index: 1, kind: input, shape index: {}]
  %s2 = inlined_call_operand.hbm [shape: f32[1,8,128], index: 2, kind: output, shape index: {0}]
  %s3 = inlined_call_operand.hbm [shape: f32[1,8,128], index: 3, kind: output, shape index: {1}]
  %4 = xla_tuple %s2, %s3
  %s5 = sld [smem:[#allocation0]]
  $region38: #{tpu_custom_call.1} parent=0
    _
  %s7 = ssub.s32 1, %s5
  %s8 = scalar_select 0, %s7, %s5
  $region1: #{tpu_custom_call.1} parent=0
    #allocation2 [shape = 'u8[8192]{0}', space=vmem, size = 0x2000, scoped, tag = 'input window, operand 0, single buffered']
    #allocation3 [shape = 's32[1]{0}', space=sflag, size = 0x4, scoped, tag = 'scoped memory for tpu_custom_call.1']
    #allocation4 [shape = 's32[1]{0}', space=sflag, size = 0x4, scoped, tag = 'scoped memory for tpu_custom_call.1']
    #allocation5 [shape = 'u8[8192]{0}', space=vmem, size = 0x2000, scoped, tag = 'input window, operand 1, single buffered']
    #allocation6 [shape = 's32[1]{0}', space=sflag, size = 0x4, scoped, tag = 'scoped memory for tpu_custom_call.1']
    #allocation7 [shape = 'u8[4096]{0}', space=vmem, size = 0x1000, scoped, tag = 'output window, operand 0, single buffered']
    #allocation8 [shape = 'u8[4096]{0}', space=vmem, size = 0x1000, scoped, tag = 'output window, operand 1, single buffered']
    #allocation9 [shape = 's32[1]{0}', space=sflag, size = 0x4, scoped, tag = 'scoped memory for tpu_custom_call.1']
    %9 = vsyncpa [#allocation3], 0
    %10 = vsyncpa [#allocation6], 0
    %11 = vsyncpa [#allocation4], 0
    %12 = vsyncpa [#allocation9], 0
    // Predicated region
    $region2: #{tpu_custom_call.1} parent=1 // pred_check
      _
    $region3: #{tpu_custom_call.1} parent=1 // pred_check_branch
      %14 = sbr.rel (0) target = $region5
    $region4: #{tpu_custom_call.1} parent=1 // pred_region
      %s15 = sadd.s32 0, 0
      %s16 = smul.u32 2, %s15
      %s18 = ssub.s32 256, 256
      %19 = vsyncadd [#allocation3], %s18
      %s20 = smul.addr %s16, 128
      %s21 = scalar_lea.hbm %s0, %s20
      %s22 = sshll.u32 [#allocation2], 4
      %s23 = int_to_ptr.vmem [resolvable:$true] %s22
      %28 = dma.hbm_to_vmem [thread:$0]  %s21, 256, %s23, [#allocation3], 128, 128, 8
    $region5: #{tpu_custom_call.1} parent=1 // pred_fallthru
      _
    // Predicated region
    $region6: #{tpu_custom_call.1} parent=1 // pred_check
      _
    $region7: #{tpu_custom_call.1} parent=1 // pred_check_branch
      %30 = sbr.rel (0) target = $region9
    $region8: #{tpu_custom_call.1} parent=1 // pred_region
      %s31 = sadd.s32 0, 0
      %s32 = smul.u32 2, %s31
      %s34 = ssub.s32 256, 256
      %35 = vsyncadd [#allocation6], %s34
      %s36 = smul.addr %s32, 128
      %s37 = scalar_lea.hbm %s1, %s36
      %s38 = sshll.u32 [#allocation5], 4
      %s39 = int_to_ptr.vmem [resolvable:$true] %s38
      %44 = dma.hbm_to_vmem [thread:$0]  %s37, 256, %s39, [#allocation6], 128, 128, 8
    $region9: #{tpu_custom_call.1} parent=1 // pred_fallthru
      _
    // Predicated region
    $region10: #{tpu_custom_call.1} parent=1 // pred_check
      _
    $region11: #{tpu_custom_call.1} parent=1 // pred_check_branch
      %46 = sbr.rel (0) target = $region13
    $region12: #{tpu_custom_call.1} parent=1 // pred_region
      %47 = dma.done [#allocation3], 256
    $region13: #{tpu_custom_call.1} parent=1 // pred_fallthru
      _
    // Predicated region
    $region14: #{tpu_custom_call.1} parent=1 // pred_check
      _
    $region15: #{tpu_custom_call.1} parent=1 // pred_check_branch
      %49 = sbr.rel (0) target = $region17
    $region16: #{tpu_custom_call.1} parent=1 // pred_region
      %50 = dma.done [#allocation6], 256
    $region17: #{tpu_custom_call.1} parent=1 // pred_fallthru
      _
    %s51 = sadd.s32 0, 0
    %s52 = smul.u32 2, %s51
    %s53 = sadd.s32 0, 0
    %s54 = smul.u32 2, %s53
    %p55 = scmp.eq.s32.totalorder 0, 0
    // Predicated region
    $region18: #{tpu_custom_call.1} parent=1 // pred_check
      %p56 = pneg %p55
    $region19: #{tpu_custom_call.1} parent=1 // pred_check_branch
      %58 = sbr.rel (%p56) target = $region21
    $region20: #{tpu_custom_call.1} parent=1 // pred_region
      %59 = vst [vmem:[#allocation7] sm:$0xff] 0.0
      %60 = vst [vmem:[#allocation8] sm:$0xff] 0.0
    $region21: #{tpu_custom_call.1} parent=1 // pred_fallthru
      _
    %v61 = vld [vmem:[#allocation5] sm:$0xff]
    %v62 = vld [vmem:[#allocation5 + $0x8] sm:$0xff]
    %v63 = vld [vmem:[#allocation2] sm:$0xff]
    %v64 = vld [vmem:[#allocation2 + $0x8] sm:$0xff]
    %v65 = vsub.f32 %v61, %v63
    %v66 = vsub.f32 %v62, %v64
    %v67 = vmul.f32 %v61, %v61
    %v68 = vmul.f32 %v62, %v62
    %v69 = vmul.f32 %v65, %v65
    %v70 = vmul.f32 %v66, %v66
    %v71 = vld [vmem:[#allocation7] sm:$0xff]
    %v72 = vadd.f32 %v67, %v68
    %v73 = vadd.f32 %v71, %v72
    %74 = vst [vmem:[#allocation7] sm:$0xff] %v73
    %v75 = vld [vmem:[#allocation8] sm:$0xff]
    %v76 = vadd.f32 %v69, %v70
    %v77 = vadd.f32 %v75, %v76
    %78 = vst [vmem:[#allocation8] sm:$0xff] %v77
    // Predicated region
    $region22: #{tpu_custom_call.1} parent=1 // pred_check
      _
    $region23: #{tpu_custom_call.1} parent=1 // pred_check_branch
      %80 = sbr.rel (0) target = $region25
    $region24: #{tpu_custom_call.1} parent=1 // pred_region
      %s82 = ssub.s32 128, 128
      %83 = vsyncadd [#allocation4], %s82
      %s85 = sshll.u32 [#allocation7], 4
      %s86 = int_to_ptr.vmem [resolvable:$true] %s85
      %88 = dma.vmem_to_hbm [thread:$0]  %s86, 128, %s2, [#allocation4]
    $region25: #{tpu_custom_call.1} parent=1 // pred_fallthru
      _
    // Predicated region
    $region26: #{tpu_custom_call.1} parent=1 // pred_check
      _
    $region27: #{tpu_custom_call.1} parent=1 // pred_check_branch
      %90 = sbr.rel (0) target = $region29
    $region28: #{tpu_custom_call.1} parent=1 // pred_region
      %s92 = ssub.s32 128, 128
      %93 = vsyncadd [#allocation9], %s92
      %s95 = sshll.u32 [#allocation8], 4
      %s96 = int_to_ptr.vmem [resolvable:$true] %s95
      %98 = dma.vmem_to_hbm [thread:$0]  %s96, 128, %s3, [#allocation9]
    $region29: #{tpu_custom_call.1} parent=1 // pred_fallthru
      _
    // Predicated region
    $region30: #{tpu_custom_call.1} parent=1 // pred_check
      _
    $region31: #{tpu_custom_call.1} parent=1 // pred_check_branch
      %100 = sbr.rel (0) target = $region33
    $region32: #{tpu_custom_call.1} parent=1 // pred_region
      %101 = dma.done [#allocation4], 128
    $region33: #{tpu_custom_call.1} parent=1 // pred_fallthru
      _
    // Predicated region
    $region34: #{tpu_custom_call.1} parent=1 // pred_check
      _
    $region35: #{tpu_custom_call.1} parent=1 // pred_check_branch
      %103 = sbr.rel (0) target = $region37
    $region36: #{tpu_custom_call.1} parent=1 // pred_region
      %104 = dma.done [#allocation9], 128
    $region37: #{tpu_custom_call.1} parent=1 // pred_fallthru
      _
    %105 = vsyncpa [#allocation3], 1
    %106 = vsyncpa [#allocation6], 1
    %107 = vsyncpa [#allocation4], 1
    %108 = vsyncpa [#allocation9], 1

</llo_original>
